<compile_context>
chip_gen: v7x
topology: tpu7x:2x2x1
jax: 0.10.0
libtpu: 0.0.40
codegen_flags: <defaults>
</compile_context>

<pallas_src>
import functools

import jax
import jax.numpy as jnp
from jax import lax
from jax.experimental import pallas as pl
from jax.experimental.pallas import tpu as pltpu

MATMUL_DTYPE = jnp.bfloat16   # MXU operand dtype (f32 accumulation)
W_DTYPE = jnp.bfloat16        # weights stored in HBM in bf16
ACT_DTYPE = jnp.bfloat16      # inter-kernel activations


def _vmem_limit_bytes():
    """Per-generation VMEM budget: ~3/4 of physical, capped at 100 MiB."""
    try:
        cap = int(pltpu.get_tpu_info().vmem_capacity_bytes)
        return min((cap * 3) // 4, 100 * 1024 * 1024)
    except Exception:
        return 48 * 1024 * 1024   # safe for v7x's 64 MiB physical VMEM


VMEM_LIMIT = _vmem_limit_bytes()
_BIG_VMEM = VMEM_LIMIT >= 80 * 1024 * 1024
TM_DEFAULT = 512
TN_DEFAULT = 2048 if _BIG_VMEM else 1024
TK_DEFAULT = 1024 if _BIG_VMEM else 512


def _pick_tile(dim, target, align):
    """Largest tile <= target that divides `dim` and is `align`-aligned;
    falls back to the full dim (always legal per the (8,128) block rule)."""
    if dim <= target:
        return dim
    t = (target // align) * align
    while t >= align:
        if dim % t == 0:
            return t
        t -= align
    return dim


def _cap_for_two_blocks(M, tm):
    """Ensure >=2 blocks along an M-only parallel axis (keeps both v7x TCs busy)."""
    half = ((M // 2) // 8) * 8
    return min(tm, half) if half >= 8 else tm


# ----------------------------------------------------------------------------
# Tiled linear (+ optional activation epilogue)
# ----------------------------------------------------------------------------
def _linear_kernel(x_ref, w_ref, b_ref, o_ref, acc_ref, *, activation, n_k):
    @pl.when(pl.program_id(2) == 0)
    def _init():
        acc_ref[...] = jnp.zeros_like(acc_ref)

    acc_ref[...] += jnp.dot(x_ref[...].astype(MATMUL_DTYPE),
                            w_ref[...].astype(MATMUL_DTYPE),
                            preferred_element_type=jnp.float32)

    @pl.when(pl.program_id(2) == n_k - 1)
    def _fin():
        y = acc_ref[...] + b_ref[...]
        if activation == "relu":
            y = jnp.maximum(y, 0.0)
        elif activation == "gelu":
            # TODO(synk): DistilBERT uses exact erf GELU; tanh approx kept for robust lowering.
            y = jax.nn.gelu(y, approximate=True)
        o_ref[...] = y.astype(o_ref.dtype)


def linear(x, w, b, activation=None, *, out_dtype=ACT_DTYPE, tm=None, tn=None, tk=None):
    """y = act(x @ w + b).  x: (M, K), w: (K, N) bf16, b: (N,) f32."""
    M, K = x.shape
    N = w.shape[1]
    tm = _pick_tile(M, tm or TM_DEFAULT, 8)
    tn = _pick_tile(N, tn or TN_DEFAULT, 128)
    tk = _pick_tile(K, tk or TK_DEFAULT, 128)
    n_k = K // tk
    return pl.pallas_call(
        functools.partial(_linear_kernel, activation=activation, n_k=n_k),
        out_shape=jax.ShapeDtypeStruct((M, N), out_dtype),
        grid=(M // tm, N // tn, n_k),
        in_specs=[
            pl.BlockSpec((tm, tk), lambda i, j, k: (i, k)),
            pl.BlockSpec((tk, tn), lambda i, j, k: (k, j)),
            pl.BlockSpec((1, tn), lambda i, j, k: (0, j)),
        ],
        out_specs=pl.BlockSpec((tm, tn), lambda i, j, k: (i, j)),
        scratch_shapes=[pltpu.VMEM((tm, tn), jnp.float32)],
        compiler_params=pltpu.CompilerParams(
            dimension_semantics=("parallel", "parallel", "arbitrary"),
            vmem_limit_bytes=VMEM_LIMIT),
    )(x, w, b.reshape(1, N))


# ----------------------------------------------------------------------------
# Fused linear + residual-add + LayerNorm epilogue (full-N output tiles)
# ----------------------------------------------------------------------------
def _linear_res_ln_kernel(x_ref, w_ref, b_ref, res_ref, g_ref, bt_ref,
                          o_ref, acc_ref, *, n_k, eps):
    @pl.when(pl.program_id(1) == 0)
    def _init():
        acc_ref[...] = jnp.zeros_like(acc_ref)

    acc_ref[...] += jnp.dot(x_ref[...].astype(MATMUL_DTYPE),
                            w_ref[...].astype(MATMUL_DTYPE),
                            preferred_element_type=jnp.float32)

    @pl.when(pl.program_id(1) == n_k - 1)
    def _fin():
        y = acc_ref[...] + b_ref[...] + res_ref[...].astype(jnp.float32)
        mu = jnp.mean(y, axis=-1, keepdims=True)
        var = jnp.mean((y - mu) * (y - mu), axis=-1, keepdims=True)
        yn = (y - mu) * lax.rsqrt(var + eps)
        o_ref[...] = (yn * g_ref[...] + bt_ref[...]).astype(o_ref.dtype)


def linear_residual_layernorm(x, w, b, residual, gamma, beta, *, eps=1e-12,
                              out_dtype=ACT_DTYPE, tm=None, tk=None):
    """LayerNorm(x @ w + b + residual).  N is un-tiled (full row for LN stats)."""
    M, K = x.shape
    N = w.shape[1]
    tm = _pick_tile(M, _cap_for_two_blocks(M, tm or TM_DEFAULT), 8)
    tk = _pick_tile(K, tk or TK_DEFAULT, 128)
    n_k = K // tk
    return pl.pallas_call(
        functools.partial(_linear_res_ln_kernel, n_k=n_k, eps=eps),
        out_shape=jax.ShapeDtypeStruct((M, N), out_dtype),
        grid=(M // tm, n_k),
        in_specs=[
            pl.BlockSpec((tm, tk), lambda i, k: (i, k)),
            pl.BlockSpec((tk, N), lambda i, k: (k, 0)),
            pl.BlockSpec((1, N), lambda i, k: (0, 0)),
            pl.BlockSpec((tm, N), lambda i, k: (i, 0)),
            pl.BlockSpec((1, N), lambda i, k: (0, 0)),
            pl.BlockSpec((1, N), lambda i, k: (0, 0)),
        ],
        out_specs=pl.BlockSpec((tm, N), lambda i, k: (i, 0)),
        scratch_shapes=[pltpu.VMEM((tm, N), jnp.float32)],
        compiler_params=pltpu.CompilerParams(
            dimension_semantics=("parallel", "arbitrary"),
            vmem_limit_bytes=VMEM_LIMIT),
    )(x, w, b.reshape(1, N), residual, gamma.reshape(1, N), beta.reshape(1, N))


# ----------------------------------------------------------------------------
# Standalone row-tiled LayerNorm (embedding LN)
# ----------------------------------------------------------------------------
def _layernorm_kernel(x_ref, g_ref, b_ref, o_ref, *, eps):
    x = x_ref[...].astype(jnp.float32)
    mu = jnp.mean(x, axis=-1, keepdims=True)
    var = jnp.mean((x - mu) * (x - mu), axis=-1, keepdims=True)
    y = (x - mu) * lax.rsqrt(var + eps)
    o_ref[...] = (y * g_ref[...] + b_ref[...]).astype(o_ref.dtype)


def layernorm(x, gamma, beta, eps=1e-12, *, out_dtype=ACT_DTYPE, tm=1024):
    M, D = x.shape
    tm = _pick_tile(M, _cap_for_two_blocks(M, tm), 8)
    return pl.pallas_call(
        functools.partial(_layernorm_kernel, eps=eps),
        out_shape=jax.ShapeDtypeStruct((M, D), out_dtype),
        grid=(M // tm,),
        in_specs=[
            pl.BlockSpec((tm, D), lambda i: (i, 0)),
            pl.BlockSpec((1, D), lambda i: (0, 0)),
            pl.BlockSpec((1, D), lambda i: (0, 0)),
        ],
        out_specs=pl.BlockSpec((tm, D), lambda i: (i, 0)),
        compiler_params=pltpu.CompilerParams(
            dimension_semantics=("parallel",),
            vmem_limit_bytes=VMEM_LIMIT),
    )(x, gamma.reshape(1, D), beta.reshape(1, D))


# ----------------------------------------------------------------------------
# Multi-head attention: no JAX-level transposes, per-head 2-D MXU matmuls,
# grid over (batch, query tiles), context written in (B, S, nh, dh) layout.
# ----------------------------------------------------------------------------
def _attn_kernel(q_ref, k_ref, v_ref, m_ref, o_ref, *, scale, nh):
    m = m_ref[...]                                        # (1, S) additive mask, f32
    for h in range(nh):                                   # static unroll over heads
        qh = q_ref[:, h, :].astype(MATMUL_DTYPE)          # (tq, dh)
        kh = k_ref[:, h, :].astype(MATMUL_DTYPE)          # (S , dh)
        vh = v_ref[:, h, :].astype(MATMUL_DTYPE)          # (S , dh)
        s = lax.dot_general(qh, kh, (((1,), (1,)), ((), ())),
                            preferred_element_type=jnp.float32)   # (tq, S)
        s = s * scale + m
        s = s - jnp.max(s, axis=-1, keepdims=True)
        p = jnp.exp(s)
        p = p * pl.reciprocal(jnp.sum(p, axis=-1, keepdims=True), approx=True)
        ctx = jnp.dot(p.astype(MATMUL_DTYPE), vh,
                      preferred_element_type=jnp.float32)          # (tq, dh)
        o_ref[:, h, :] = ctx.astype(o_ref.dtype)


def multihead_attention(qkv, mask_add, scale, *, tq=256):
    """qkv: (B, S, 3, nh, dh) (free reshape of the fused QKV linear output).
    mask_add: (B, 1, S) additive (-1e9 on padded keys).  Returns (B, S, nh, dh)."""
    B, S, three, nh, dh = qkv.shape
    assert three == 3
    tq = _pick_tile(S, tq, 8)
    q_spec = pl.BlockSpec((None, tq, None, nh, dh), lambda b, sq: (b, sq, 0, 0, 0))
    k_spec = pl.BlockSpec((None, S, None, nh, dh), lambda b, sq: (b, 0, 1, 0, 0))
    v_spec = pl.BlockSpec((None, S, None, nh, dh), lambda b, sq: (b, 0, 2, 0, 0))
    m_spec = pl.BlockSpec((None, 1, S), lambda b, sq: (b, 0, 0))
    o_spec = pl.BlockSpec((None, tq, nh, dh), lambda b, sq: (b, sq, 0, 0))
    return pl.pallas_call(
        functools.partial(_attn_kernel, scale=scale, nh=nh),
        out_shape=jax.ShapeDtypeStruct((B, S, nh, dh), ACT_DTYPE),
        grid=(B, S // tq),
        in_specs=[q_spec, k_spec, v_spec, m_spec],
        out_specs=o_spec,
        compiler_params=pltpu.CompilerParams(
            dimension_semantics=("parallel", "parallel"),
            vmem_limit_bytes=VMEM_LIMIT),
    )(qkv, qkv, qkv, mask_add)


# ----------------------------------------------------------------------------
# Classification head: pre_classifier + ReLU (+ dropout==identity) + both
# task classifiers in one MXU matmul (H, 2); task column selected outside.
# ----------------------------------------------------------------------------
def _head_kernel(x_ref, wp_ref, bp_ref, wc_ref, bc_ref, o_ref):
    pooled = jnp.dot(x_ref[...].astype(MATMUL_DTYPE), wp_ref[...].astype(MATMUL_DTYPE),
                     preferred_element_type=jnp.float32) + bp_ref[...]
    pooled = jnp.maximum(pooled, 0.0)
    logits = jnp.dot(pooled.astype(MATMUL_DTYPE), wc_ref[...].astype(MATMUL_DTYPE),
                     preferred_element_type=jnp.float32) + bc_ref[...]
    o_ref[...] = logits.astype(o_ref.dtype)


def classification_head(cls_tok, w_pre, b_pre, w_cls, b_cls):
    """cls_tok: (B, D); w_pre: (D, H); w_cls: (H, n_tasks) -> (B, n_tasks) f32 logits."""
    B, D = cls_tok.shape
    H = w_pre.shape[1]
    n_out = w_cls.shape[1]
    return pl.pallas_call(
        _head_kernel,
        out_shape=jax.ShapeDtypeStruct((B, n_out), jnp.float32),
        grid=(1,),
        in_specs=[
            pl.BlockSpec((B, D), lambda i: (0, 0)),
            pl.BlockSpec((D, H), lambda i: (0, 0)),
            pl.BlockSpec((1, H), lambda i: (0, 0)),
            pl.BlockSpec((H, n_out), lambda i: (0, 0)),
            pl.BlockSpec((1, n_out), lambda i: (0, 0)),
        ],
        out_specs=pl.BlockSpec((B, n_out), lambda i: (0, 0)),
        compiler_params=pltpu.CompilerParams(vmem_limit_bytes=VMEM_LIMIT),
    )(cls_tok, w_pre, b_pre.reshape(1, H), w_cls, b_cls.reshape(1, n_out))


# ----------------------------------------------------------------------------
# Synthetic DistilBERT-style encoder + multi-task head (forward only)
# ----------------------------------------------------------------------------
def init_params(key, cfg):
    keys = iter(jax.random.split(key, 64))

    def nrm(shape, scale=0.02):
        return (scale * jax.random.normal(next(keys), shape)).astype(jnp.float32)

    D, F, H = cfg["dim"], cfg["ffn"], cfg["hidden_dim"]
    params = {
        "word_emb": nrm((cfg["vocab"], D)),
        "pos_emb": nrm((cfg["max_pos"], D)),
        "emb_ln_g": jnp.ones((D,), jnp.float32),
        "emb_ln_b": jnp.zeros((D,), jnp.float32),
        "layers": [],
        "w_pre": nrm((D, H)).astype(W_DTYPE),
        "b_pre": jnp.zeros((H,), jnp.float32),
        # classifier_1 / classifier_2 stacked column-wise (H, 2)
        "w_cls": nrm((H, 2)).astype(W_DTYPE),
        "b_cls": jnp.zeros((2,), jnp.float32),
    }
    for _ in range(cfg["n_layers"]):
        wq, wk, wv = nrm((D, D)), nrm((D, D)), nrm((D, D))
        params["layers"].append({
            # fused QKV weight (D, 3D), stored bf16 (HBM->VMEM traffic halved)
            "w_qkv": jnp.concatenate([wq, wk, wv], axis=1).astype(W_DTYPE),
            "b_qkv": jnp.zeros((3 * D,), jnp.float32),
            "wo": nrm((D, D)).astype(W_DTYPE), "bo": jnp.zeros((D,), jnp.float32),
            "sa_ln_g": jnp.ones((D,), jnp.float32), "sa_ln_b": jnp.zeros((D,), jnp.float32),
            "w1": nrm((D, F)).astype(W_DTYPE), "b1": jnp.zeros((F,), jnp.float32),
            "w2": nrm((F, D)).astype(W_DTYPE), "b2": jnp.zeros((D,), jnp.float32),
            "out_ln_g": jnp.ones((D,), jnp.float32), "out_ln_b": jnp.zeros((D,), jnp.float32),
        })
    return params


def encoder_forward(params, input_ids, attention_mask, cfg):
    B, S = input_ids.shape
    D, nh = cfg["dim"], cfg["n_heads"]
    dh = D // nh

    # embeddings (gather is glue), embedding LayerNorm as a Pallas kernel (-> bf16)
    x = params["word_emb"][input_ids] + params["pos_emb"][jnp.arange(S)][None, :, :]
    x = layernorm(x.reshape(B * S, D), params["emb_ln_g"], params["emb_ln_b"])   # (B*S, D)

    # additive attention mask kept at (B, 1, S) — not replicated per head
    mask_add = ((1.0 - attention_mask.astype(jnp.float32)) * -1e9)[:, None, :]

    for layer in params["layers"]:
        xr = x                                                        # residual (B*S, D) bf16
        # fused QKV projection through the tiled linear path (one (D, 3D) weight)
        qkv = linear(x, layer["w_qkv"], layer["b_qkv"])               # (B*S, 3D) bf16
        qkv = qkv.reshape(B, S, 3, nh, dh)                            # free reshape, no transpose
        ctx = multihead_attention(qkv, mask_add, scale=1.0 / (dh ** 0.5))  # (B, S, nh, dh)
        ctx = ctx.reshape(B * S, D)                                   # free reshape, no transpose

        # attention output projection + residual + LayerNorm, fused
        x = linear_residual_layernorm(ctx, layer["wo"], layer["bo"], xr,
                                      layer["sa_ln_g"], layer["sa_ln_b"])
        # FFN: w1 + GELU, then w2 + residual + LayerNorm, fused
        h = linear(x, layer["w1"], layer["b1"], activation="gelu")
        x = linear_residual_layernorm(h, layer["w2"], layer["b2"], x,
                                      layer["out_ln_g"], layer["out_ln_b"])

    return x.reshape(B, S, D)   # == base_output[0]


def multitask_distil_forward(params, input_ids, attention_mask, task_id, cfg):
    hidden_state = encoder_forward(params, input_ids, attention_mask, cfg)
    pooler = hidden_state[:, 0]  # CLS token, (B, D)
    # pre_classifier + ReLU + dropout(eval: identity) + both classifiers fused in one
    # Pallas kernel; the task column is selected outside (task_id is a trace-time int,
    # matching PyTorch's `if task_id == ...`).
    logits = classification_head(pooler, params["w_pre"], params["b_pre"],
                                 params["w_cls"], params["b_cls"])   # (B, 2) f32
    if task_id == 1:
        return logits[:, 0:1]
    elif task_id == 2:
        return logits[:, 1:2]
    else:
        assert False, "Bad Task ID passed"
    # TODO(synk): training-mode dropout (p=0.1) omitted; forward implements eval semantics.


# ----------------------------------------------------------------------------
if __name__ == "__main__":
    cfg = dict(vocab=100, max_pos=16, dim=32, n_heads=4, ffn=64, n_layers=2, hidden_dim=32)
    B, S = 2, 8

    root = jax.random.PRNGKey(0)
    k_param, k_ids = jax.random.split(root)
    params = init_params(k_param, cfg)

    input_ids = jax.random.randint(k_ids, (B, S), 0, cfg["vocab"], dtype=jnp.int32)
    attention_mask = jnp.ones((B, S), dtype=jnp.int32)

    out1 = multitask_distil_forward(params, input_ids, attention_mask, task_id=1, cfg=cfg)
    out2 = multitask_distil_forward(params, input_ids, attention_mask, task_id=2, cfg=cfg)
    out1 = jax.block_until_ready(out1)
    out2 = jax.block_until_ready(out2)

    assert out1.shape == (B, 1) and out2.shape == (B, 1)
    assert out1.dtype == jnp.float32
    print("KERNEL_OK")
</pallas_src>

<mosaic_0001>
module attributes {stable_mosaic.version = 11 : i64} {
  func.func @_layernorm_kernel(%arg0: i32, %arg1: memref<8x32xf32, #tpu.memory_space<vmem>>, %arg2: memref<1x32xf32, #tpu.memory_space<vmem>>, %arg3: memref<1x32xf32, #tpu.memory_space<vmem>>, %arg4: memref<8x32xbf16, #tpu.memory_space<vmem>>) attributes {dimension_semantics = [#tpu.dimension_semantics<parallel>], iteration_bounds = array<i64: 2>, scalar_prefetch = 0 : i64, scratch_operands = 0 : i64, tpu.core_type = #tpu.core_type<tc>, window_params = [{transform_indices = @transform_0, window_bounds = array<i64: 8, 32>}, {pipeline_mode = #tpu.pipeline_mode<synchronous>, transform_indices = @transform_1, window_bounds = array<i64: 1, 32>}, {pipeline_mode = #tpu.pipeline_mode<synchronous>, transform_indices = @transform_2, window_bounds = array<i64: 1, 32>}, {transform_indices = @transform_3, window_bounds = array<i64: 8, 32>}]} {
    %c0 = arith.constant 0 : index
    %c0_0 = arith.constant 0 : index
    %0 = vector.load %arg1[%c0, %c0_0] : memref<8x32xf32, #tpu.memory_space<vmem>>, vector<8x32xf32>
    %cst = arith.constant dense<0.000000e+00> : vector<8xf32>
    %1 = vector.multi_reduction <add>, %0, %cst [1] : vector<8x32xf32> to vector<8xf32>
    %2 = vector.shape_cast %1 : vector<8xf32> to vector<8x1xf32>
    %cst_1 = arith.constant 3.200000e+01 : f32
    %3 = vector.broadcast %cst_1 : f32 to vector<8x1xf32>
    %4 = arith.divf %2, %3 : vector<8x1xf32>
    %5 = vector.broadcast %4 : vector<8x1xf32> to vector<8x32xf32>
    %6 = arith.subf %0, %5 : vector<8x32xf32>
    %7 = vector.broadcast %4 : vector<8x1xf32> to vector<8x32xf32>
    %8 = arith.subf %0, %7 : vector<8x32xf32>
    %9 = arith.mulf %6, %8 : vector<8x32xf32>
    %cst_2 = arith.constant dense<0.000000e+00> : vector<8xf32>
    %10 = vector.multi_reduction <add>, %9, %cst_2 [1] : vector<8x32xf32> to vector<8xf32>
    %11 = vector.shape_cast %10 : vector<8xf32> to vector<8x1xf32>
    %cst_3 = arith.constant 3.200000e+01 : f32
    %12 = vector.broadcast %cst_3 : f32 to vector<8x1xf32>
    %13 = arith.divf %11, %12 : vector<8x1xf32>
    %14 = vector.broadcast %4 : vector<8x1xf32> to vector<8x32xf32>
    %15 = arith.subf %0, %14 : vector<8x32xf32>
    %cst_4 = arith.constant 9.99999996E-13 : f32
    %16 = vector.broadcast %cst_4 : f32 to vector<8x1xf32>
    %17 = arith.addf %13, %16 : vector<8x1xf32>
    %18 = math.rsqrt %17 : vector<8x1xf32>
    %19 = vector.broadcast %18 : vector<8x1xf32> to vector<8x32xf32>
    %20 = arith.mulf %15, %19 : vector<8x32xf32>
    %c0_5 = arith.constant 0 : index
    %c0_6 = arith.constant 0 : index
    %21 = vector.load %arg2[%c0_5, %c0_6] : memref<1x32xf32, #tpu.memory_space<vmem>>, vector<1x32xf32>
    %22 = vector.broadcast %21 : vector<1x32xf32> to vector<8x32xf32>
    %23 = arith.mulf %20, %22 : vector<8x32xf32>
    %c0_7 = arith.constant 0 : index
    %c0_8 = arith.constant 0 : index
    %24 = vector.load %arg3[%c0_7, %c0_8] : memref<1x32xf32, #tpu.memory_space<vmem>>, vector<1x32xf32>
    %25 = vector.broadcast %24 : vector<1x32xf32> to vector<8x32xf32>
    %26 = arith.addf %23, %25 : vector<8x32xf32>
    %27 = arith.truncf %26 : vector<8x32xf32> to vector<8x32xbf16>
    %c0_9 = arith.constant 0 : index
    %c0_10 = arith.constant 0 : index
    %28 = vector.load %arg4[%c0_9, %c0_10] : memref<8x32xbf16, #tpu.memory_space<vmem>>, vector<8x32xbf16>
    tpu.vector_store %arg4[%c0_9, %c0_10], %27 {strides = array<i32>} : memref<8x32xbf16, #tpu.memory_space<vmem>>, vector<8x32xbf16>,
    return
  }
  func.func @transform_0(%arg0: i32) -> (i32, i32) {
    %c0_i32 = arith.constant 0 : i32
    %c0_i32_0 = arith.constant 0 : i32
    return %arg0, %c0_i32 : i32, i32
  }
  func.func @transform_1(%arg0: i32) -> (i32, i32) {
    %c0_i32 = arith.constant 0 : i32
    %c0_i32_0 = arith.constant 0 : i32
    %c0_i32_1 = arith.constant 0 : i32
    return %c0_i32, %c0_i32_0 : i32, i32
  }
  func.func @transform_2(%arg0: i32) -> (i32, i32) {
    %c0_i32 = arith.constant 0 : i32
    %c0_i32_0 = arith.constant 0 : i32
    %c0_i32_1 = arith.constant 0 : i32
    return %c0_i32, %c0_i32_0 : i32, i32
  }
  func.func @transform_3(%arg0: i32) -> (i32, i32) {
    %c0_i32 = arith.constant 0 : i32
    %c0_i32_0 = arith.constant 0 : i32
    return %arg0, %c0_i32 : i32, i32
  }
}

</mosaic_0001>

<llo_original>
// kernel: tpu_custom_call.1
$region0: #{tpu_custom_call.1}
  #allocation0 [shape = 'u32[]', space=smem, size = 0x4, offset = 0x4, fixed_abs, tag = 'smem constant byte address 0x4 - core index']
  #allocation1 [shape = 'u32[144,128]{1,0:T(1,128)}', space=vmem, size = 0x12000, scoped, tag = 'internal scratch']
  %s0 = inlined_call_operand.hbm [shape: f32[16,32], index: 0, kind: input, shape index: {}]
  %s1 = inlined_call_operand.vmem [shape: f32[1,32], index: 1, kind: input, shape index: {}]
  %s2 = inlined_call_operand.vmem [shape: f32[1,32], index: 2, kind: input, shape index: {}]
  %s3 = inlined_call_operand.hbm [shape: bf16[16,32], index: 3, kind: output, shape index: {}]
  %s4 = sld [smem:[#allocation0]]
  $region49: #{tpu_custom_call.1} parent=0
    _
  %s6 = ssub.s32 1, %s4
  %s7 = scalar_select 0, %s6, %s4
  $region1: #{tpu_custom_call.1} parent=0
    #allocation2 [shape = 'u8[8192]{0}', space=vmem, size = 0x2000, scoped, tag = 'input window, operand 0']
    #allocation3 [shape = 's32[2]{0}', space=sflag, size = 0x8, scoped, tag = 'scoped memory for tpu_custom_call.1']
    #allocation4 [shape = 's32[2]{0}', space=sflag, size = 0x8, scoped, tag = 'scoped memory for tpu_custom_call.1']
    #allocation5 [shape = 'u8[4096]{0}', space=vmem, size = 0x1000, scoped, tag = 'output window, operand 0']
    %8 = vsyncpa [#allocation3], 0
    %s9 = scalar_lea.sflag [#allocation3], 1
    %10 = vsyncpa %s9, 0
    %11 = vsyncpa [#allocation4], 0
    %s12 = scalar_lea.sflag [#allocation4], 1
    %13 = vsyncpa %s12, 0
    loop: start=0, step=1, limit=4
    $region2: #{tpu_custom_call.1} parent=1 // loop_pre_header
      _
    $region3: #{tpu_custom_call.1} parent=1 // loop_header
      %s15 = sphi 0, %s19
      %p16 = scmp.ge.s32.totalorder %s15, 4
      %s25 = sphi 0, %s27
      %s28 = sphi 0, %s25
      %s29 = sphi 0, %s28
      %s45 = sphi 0, %s29
      %s49 = sphi 0, %s49
      %s51 = sphi 0, %s49
      %s52 = sphi 0, %s51
      %s66 = sphi 0, %s52
      %s70 = sphi 0, %s70
      %s72 = sphi 0, %s70
      %s73 = sphi 0, %s72
      %s87 = sphi 0, %s73
      %s93 = sphi 0, %s95
      %s96 = sphi 0, %s93
      %s97 = sphi 0, %s96
      %s113 = sphi 0, %s97
    $region4: #{tpu_custom_call.1} parent=1 // loop_header_branch
      %18 = sbr.rel (%p16) target = $region8
    $region5: #{tpu_custom_call.1} parent=1 // loop_body
      %s20 = ssub.s32 %s15, 1
      %s21 = ssub.s32 %s15, 2
      %s22 = sadd.s32 %s15, 1
      %s23 = ssub.s32 %s15, %s22
      %p24 = scmp.eq.s32.totalorder %s23, 0
      %s26 = sadd.s32 %s25, 1
      %s27 = scalar_select %p24, %s25, %s26
      %p30 = pneg %p24
      %p31 = scmp.eq.s32.totalorder %s15, 1
      %p32 = por %p30, %p31
      %p33 = scmp.ne.s32.totalorder %s25, %s28
      %p34 = scmp.eq.s32.totalorder %s15, 0
      %p35 = por %p33, %p34
      %p36 = scmp.ne.s32.totalorder %s25, %s28
      %p37 = scmp.eq.s32.totalorder %s20, 1
      %p38 = por %p36, %p37
      %p39 = scmp.ne.s32.totalorder %s28, %s29
      %p40 = scmp.eq.s32.totalorder %s20, 0
      %p41 = por %p39, %p40
      %p42 = scmp.ne.s32.totalorder %s28, %s29
      %p43 = scmp.eq.s32.totalorder %s21, 1
      %p44 = por %p42, %p43
      %p46 = scmp.ne.s32.totalorder %s29, %s45
      %p47 = scmp.eq.s32.totalorder %s21, 0
      %p48 = por %p46, %p47
      %s50 = sadd.s32 %s49, 1
      %p53 = scmp.eq.s32.totalorder %s15, 1
      %p54 = scmp.ne.s32.totalorder %s49, %s51
      %p55 = scmp.eq.s32.totalorder %s15, 0
      %p56 = por %p54, %p55
      %p57 = scmp.ne.s32.totalorder %s49, %s51
      %p58 = scmp.eq.s32.totalorder %s20, 1
      %p59 = por %p57, %p58
      %p60 = scmp.ne.s32.totalorder %s51, %s52
      %p61 = scmp.eq.s32.totalorder %s20, 0
      %p62 = por %p60, %p61
      %p63 = scmp.ne.s32.totalorder %s51, %s52
      %p64 = scmp.eq.s32.totalorder %s21, 1
      %p65 = por %p63, %p64
      %p67 = scmp.ne.s32.totalorder %s52, %s66
      %p68 = scmp.eq.s32.totalorder %s21, 0
      %p69 = por %p67, %p68
      %s71 = sadd.s32 %s70, 1
      %p74 = scmp.eq.s32.totalorder %s15, 1
      %p75 = scmp.ne.s32.totalorder %s70, %s72
      %p76 = scmp.eq.s32.totalorder %s15, 0
      %p77 = por %p75, %p76
      %p78 = scmp.ne.s32.totalorder %s70, %s72
      %p79 = scmp.eq.s32.totalorder %s20, 1
      %p80 = por %p78, %p79
      %p81 = scmp.ne.s32.totalorder %s72, %s73
      %p82 = scmp.eq.s32.totalorder %s20, 0
      %p83 = por %p81, %p82
      %p84 = scmp.ne.s32.totalorder %s72, %s73
      %p85 = scmp.eq.s32.totalorder %s21, 1
      %p86 = por %p84, %p85
      %p88 = scmp.ne.s32.totalorder %s73, %s87
      %p89 = scmp.eq.s32.totalorder %s21, 0
      %p90 = por %p88, %p89
      %s91 = ssub.s32 %s15, %s22
      %p92 = scmp.eq.s32.totalorder %s91, 0
      %s94 = sadd.s32 %s93, 1
      %s95 = scalar_select %p92, %s93, %s94
      %p98 = pneg %p92
      %p99 = scmp.eq.s32.totalorder %s15, 1
      %p100 = por %p98, %p99
      %p101 = scmp.ne.s32.totalorder %s93, %s96
      %p102 = scmp.eq.s32.totalorder %s15, 0
      %p103 = por %p101, %p102
      %p104 = scmp.ne.s32.totalorder %s93, %s96
      %p105 = scmp.eq.s32.totalorder %s20, 1
      %p106 = por %p104, %p105
      %p107 = scmp.ne.s32.totalorder %s96, %s97
      %p108 = scmp.eq.s32.totalorder %s20, 0
      %p109 = por %p107, %p108
      %p110 = scmp.ne.s32.totalorder %s96, %s97
      %p111 = scmp.eq.s32.totalorder %s21, 1
      %p112 = por %p110, %p111
      %p114 = scmp.ne.s32.totalorder %s97, %s113
      %p115 = scmp.eq.s32.totalorder %s21, 0
      %p116 = por %p114, %p115
      %p117 = scmp.le.s32.totalorder 1, %s15
      %p118 = scmp.lt.s32.totalorder %s15, 3
      %p119 = pnand %p117, %p118
      %p120 = pneg %p119
      // Predicated region
      $region9: #{tpu_custom_call.1} parent=5 // pred_check
        _
      $region10: #{tpu_custom_call.1} parent=5 // pred_check_branch
        %122 = sbr.rel (%p119) target = $region12
      $region11: #{tpu_custom_call.1} parent=5 // pred_region
        %s123 = ssub.s32 %s15, 1
        // Predicated region
        $region13: #{tpu_custom_call.1} parent=11 // pred_check
          %p124 = pneg %p62
        $region14: #{tpu_custom_call.1} parent=11 // pred_check_branch
          %126 = sbr.rel (%p124) target = $region16
        $region15: #{tpu_custom_call.1} parent=11 // pred_region
          _
        $region16: #{tpu_custom_call.1} parent=11 // pred_fallthru
          _
        // Predicated region
        $region17: #{tpu_custom_call.1} parent=11 // pred_check
          %p127 = pneg %p83
        $region18: #{tpu_custom_call.1} parent=11 // pred_check_branch
          %129 = sbr.rel (%p127) target = $region20
        $region19: #{tpu_custom_call.1} parent=11 // pred_region
          _
        $region20: #{tpu_custom_call.1} parent=11 // pred_fallthru
          _
      $region12: #{tpu_custom_call.1} parent=5 // pred_fallthru
        _
      %p130 = scmp.lt.s32.totalorder %s15, 2
      // Predicated region
      $region21: #{tpu_custom_call.1} parent=5 // pred_check
        %p131 = pneg %p130
      $region22: #{tpu_custom_call.1} parent=5 // pred_check_branch
        %133 = sbr.rel (%p131) target = $region24
      $region23: #{tpu_custom_call.1} parent=5 // pred_region
        // Predicated region
        $region25: #{tpu_custom_call.1} parent=23 // pred_check
          %p134 = pneg %p35
        $region26: #{tpu_custom_call.1} parent=23 // pred_check_branch
          %136 = sbr.rel (%p134) target = $region28
        $region27: #{tpu_custom_call.1} parent=23 // pred_region
          %s137 = sand.u32 %s25, 1
          %s138 = scalar_lea.sflag [#allocation3], %s137
          %s139 = sand.u32 %s25, 1
          %s140 = smul.addr %s139, 8
          %s141 = scalar_lea.vmem [#allocation2], %s140
          %s143 = ssub.s32 128, 128
          %144 = vsyncadd %s138, %s143
          %s145 = smul.addr %s15, 128
          %s146 = scalar_lea.hbm %s0, %s145
          %s148 = sshll.u32 %s141, 4
          %s149 = int_to_ptr.vmem [resolvable:$true] %s148
          %151 = dma.hbm_to_vmem [thread:$0]  %s146, 128, %s149, %s138
        $region28: #{tpu_custom_call.1} parent=23 // pred_fallthru
          _
      $region24: #{tpu_custom_call.1} parent=5 // pred_fallthru
        _
      %p152 = scmp.le.s32.totalorder 1, %s15
      %p153 = scmp.lt.s32.totalorder %s15, 3
      %p154 = pnand %p152, %p153
      %p155 = pneg %p154
      // Predicated region
      $region29: #{tpu_custom_call.1} parent=5 // pred_check
        _
      $region30: #{tpu_custom_call.1} parent=5 // pred_check_branch
        %157 = sbr.rel (%p154) target = $region32
      $region31: #{tpu_custom_call.1} parent=5 // pred_region
        %s158 = ssub.s32 %s15, 1
        %s159 = sand.u32 %s28, 1
        %s160 = scalar_lea.sflag [#allocation3], %s159
        %s161 = sand.u32 %s28, 1
        %s162 = smul.addr %s161, 8
        %s163 = scalar_lea.vmem [#allocation2], %s162
        // Predicated region
        $region33: #{tpu_custom_call.1} parent=31 // pred_check
          %p164 = pneg %p41
        $region34: #{tpu_custom_call.1} parent=31 // pred_check_branch
          %166 = sbr.rel (%p164) target = $region36
        $region35: #{tpu_custom_call.1} parent=31 // pred_region
          %167 = dma.done %s160, 128
        $region36: #{tpu_custom_call.1} parent=31 // pred_fallthru
          _
        %s168 = sand.u32 %s28, 1
        %s169 = scalar_lea.sflag [#allocation3], %s168
        %s170 = sand.u32 %s28, 1
        %s171 = smul.addr %s170, 8
        %s172 = scalar_lea.vmem [#allocation2], %s171
        %p173 = pneg %p41
        %p174 = pneg %p38
        %p175 = pneg %p62
        %p176 = pneg %p59
        %p177 = pneg %p83
        %p178 = pneg %p80
        %p179 = pneg %p109
        %p180 = pneg %p106
        %s181 = sand.u32 %s96, 1
        %s182 = scalar_lea.sflag [#allocation4], %s181
        %s183 = sand.u32 %s96, 1
        %s184 = smul.addr %s183, 4
        %s185 = scalar_lea.vmem [#allocation5], %s184
        %v186 = vld [vmem:[%s163] sm:$0xff]
        %vm187 = vcmask 261120
        %v188 = vsel %vm187, %v186, 0.0
        %189 = vadd.xlane.f32.xlu0 %v188
        %v190 = vpop.xlane.xlu0 %189
        %v191 = vrcp.pop 32.0
        %v192 = vmul.f32 %v190, %v191
        %v193 = vsub.f32 %v186, %v192
        %v194 = vmul.f32 %v193, %v193
        %v195 = vsel %vm187, %v194, 0.0
        %196 = vadd.xlane.f32.xlu0 %v195
        %v197 = vpop.xlane.xlu0 %196
        %v198 = vmul.f32 %v197, %v191
        %v199 = vadd.f32 %v198, 1e-12
        %v200 = vrsqrt.pop %v199
        %v201 = vmul.f32 %v193, %v200
        %v202 = vld [vmem:[%s1] sm:$0x1]
        %v204 = vlaneseq
        %v205 = vshrl.u32 %v204, 7
        %v206 = vsub.s32 0, %v205
        %v207 = vrot.slane %v202, %v206
        %v209 = vmul.f32 %v201, %v207
        %v210 = vld [vmem:[%s2] sm:$0x1]
        %v212 = vlaneseq
        %v213 = vshrl.u32 %v212, 7
        %v214 = vsub.s32 0, %v213
        %v215 = vrot.slane %v210, %v214
        %v217 = vadd.f32 %v209, %v215
        %v218 = vpack.c.bf16 %v217, %v217
        %vm219 = vcmask 257024
        %220 = vst.msk [vmem:[%s185] sm:$0xf] %vm219, %v218
        %s221 = sand.u32 %s96, 1
        %s222 = scalar_lea.sflag [#allocation4], %s221
        %s223 = sand.u32 %s96, 1
        %s224 = smul.addr %s223, 4
        %s225 = scalar_lea.vmem [#allocation5], %s224
        // Predicated region
        $region37: #{tpu_custom_call.1} parent=31 // pred_check
          %p226 = pneg %p106
        $region38: #{tpu_custom_call.1} parent=31 // pred_check_branch
          %228 = sbr.rel (%p226) target = $region40
        $region39: #{tpu_custom_call.1} parent=31 // pred_region
          %s230 = ssub.s32 64, 64
          %231 = vsyncadd %s222, %s230
          %s232 = smul.addr %s20, 64
          %s233 = scalar_lea.hbm %s3, %s232
          %s235 = sshll.u32 %s225, 4
          %s236 = int_to_ptr.vmem [resolvable:$true] %s235
          %238 = dma.vmem_to_hbm [thread:$0]  %s236, 64, %s233, %s222
        $region40: #{tpu_custom_call.1} parent=31 // pred_fallthru
          _
      $region32: #{tpu_custom_call.1} parent=5 // pred_fallthru
        _
      %p239 = scmp.le.s32.totalorder 2, %s15
      // Predicated region
      $region41: #{tpu_custom_call.1} parent=5 // pred_check
        %p240 = pneg %p239
      $region42: #{tpu_custom_call.1} parent=5 // pred_check_branch
        %242 = sbr.rel (%p240) target = $region44
      $region43: #{tpu_custom_call.1} parent=5 // pred_region
        %s243 = ssub.s32 %s15, 2
        // Predicated region
        $region45: #{tpu_custom_call.1} parent=43 // pred_check
          %p244 = pneg %p112
        $region46: #{tpu_custom_call.1} parent=43 // pred_check_branch
          %246 = sbr.rel (%p244) target = $region48
        $region47: #{tpu_custom_call.1} parent=43 // pred_region
          %s247 = sand.u32 %s97, 1
          %s248 = scalar_lea.sflag [#allocation4], %s247
          %s249 = sand.u32 %s97, 1
          %s250 = smul.addr %s249, 4
          %s251 = scalar_lea.vmem [#allocation5], %s250
          %252 = dma.done %s248, 64
        $region48: #{tpu_custom_call.1} parent=43 // pred_fallthru
          _
      $region44: #{tpu_custom_call.1} parent=5 // pred_fallthru
        _
    $region6: #{tpu_custom_call.1} parent=1 // loop_footer
      %s19 = sadd.s32 1, %s15
    $region7: #{tpu_custom_call.1} parent=1 // loop_footer_branch
      %14 = sbr.rel target = $region3
    $region8: #{tpu_custom_call.1} parent=1 // loop_exit
      _
    %253 = vsyncpa [#allocation3], 1
    %s254 = scalar_lea.sflag [#allocation3], 1
    %255 = vsyncpa %s254, 1
    %256 = vsyncpa [#allocation4], 1
    %s257 = scalar_lea.sflag [#allocation4], 1
    %258 = vsyncpa %s257, 1

</llo_original>
